<compile_context>
chip_gen: v7x
topology: tpu7x:2x2x1
jax: 0.10.0
libtpu: 0.0.40
codegen_flags: <defaults>
</compile_context>

<pallas_src>
import functools

import jax
import jax.numpy as jnp
from jax import lax
from jax.experimental import pallas as pl
from jax.experimental.pallas import tpu as pltpu

_F32 = 4  # bytes


def _round_up(x, m):
    return (x + m - 1) // m * m


def _tpu_vmem_bytes():
    try:
        info = pltpu.get_tpu_info()
        cap = getattr(info, "vmem_capacity_bytes", None)
        if cap:
            return int(cap)
    except Exception:
        pass
    return 64 << 20  # conservative default: v7x per-TensorCore VMEM


def _clamp_vmem(want, cap):
    want = max(int(want), 32 << 20)
    want = min(want, cap - (4 << 20))   # leave Mosaic internal-scratch headroom
    return max(want, 16 << 20)


def _choose_tiling(b, cap):
    """Pick (tile, padded_batch): tile % 8 == 0, tile | padded_batch."""
    if b <= cap:
        t = _round_up(max(b, 8), 8)
        return t, t
    # Prefer 128-aligned divisors of b; prefer an even number of row tiles so
    # the "parallel" row axis splits evenly across v7x's two TensorCores.
    for need_even in (True, False):
        for t in range(cap, 127, -128):
            if b % t == 0 and ((b // t) % 2 == 0 or not need_even):
                return t, b
    # No aligned divisor: pad the batch; padded rows are masked in-kernel.
    return cap, _round_up(b, cap)


def _norm_block_rows(b_pad, t, dp, itemsize, vmem_cap):
    """Large row blocks for the HBM-bound inverse-norm pre-pass."""
    ni = b_pad // t
    budget_rows = max(8, (vmem_cap // 4) // (4 * dp * itemsize))
    target = min(1024, budget_rows)
    k = max(1, min(ni, max(1, target // t)))
    while ni % k:
        k -= 1
    return t * k


# ---------------------------------------------------------------------------
# Stage 1: per-row inverse L2 norms (tiny output, memory-bound).
# ---------------------------------------------------------------------------
def _inv_norm_kernel(x_ref, y_ref, ix_ref, iy_ref, *, eps):
    x = x_ref[...].astype(jnp.float32)
    y = y_ref[...].astype(jnp.float32)
    ix_ref[...] = lax.rsqrt(
        jnp.maximum(jnp.sum(x * x, axis=1, keepdims=True), eps * eps))
    iy_ref[...] = lax.rsqrt(
        jnp.maximum(jnp.sum(y * y, axis=1, keepdims=True), eps * eps))


def _inverse_norms(x, y, rows_per_block, vmem_limit):
    b_pad, dp = x.shape
    spec_in = pl.BlockSpec((rows_per_block, dp), lambda i: (i, 0))
    spec_out = pl.BlockSpec((rows_per_block, 1), lambda i: (i, 0))
    return pl.pallas_call(
        functools.partial(_inv_norm_kernel, eps=1e-12),
        out_shape=(jax.ShapeDtypeStruct((b_pad, 1), jnp.float32),
                   jax.ShapeDtypeStruct((b_pad, 1), jnp.float32)),
        grid=(b_pad // rows_per_block,),
        in_specs=[spec_in, spec_in],
        out_specs=(spec_out, spec_out),
        compiler_params=pltpu.CompilerParams(
            dimension_semantics=("parallel",),
            vmem_limit_bytes=vmem_limit),
    )(x, y)


# ---------------------------------------------------------------------------
# Stage 2: fused NT-Xent over an (ni, ni) tile grid.
# ---------------------------------------------------------------------------
def _ntxent_body(xr, yr, xc, yc, ix_ref, iy_ref, out_ref, dtop_ref, dbot_ref,
                 *, t, b_valid, has_pad, inv_t, scale, mm_dtype, precision):
    i = pl.program_id(0)
    j = pl.program_id(1)
    nj = pl.num_programs(1)
    r0 = pl.multiple_of(i * t, t)
    c0 = pl.multiple_of(j * t, t)

    @pl.when(j == 0)
    def _init():
        dtop_ref[...] = jnp.zeros_like(dtop_ref)
        dbot_ref[...] = jnp.zeros_like(dbot_ref)

    # Precomputed inverse L2 norms (f32, VMEM-resident, tiny reads).
    irx = ix_ref[pl.ds(r0, t), :]
    iry = iy_ref[pl.ds(r0, t), :]
    icx = ix_ref[pl.ds(c0, t), :]
    icy = iy_ref[pl.ds(c0, t), :]

    # Column operands normalized on the VPU before the MXU; row-side inverse
    # norms folded into the exp argument so raw row tiles feed the MXU.
    a_xr = xr.astype(mm_dtype)
    a_yr = yr.astype(mm_dtype)
    a_xc = (xc.astype(jnp.float32) * icx).astype(mm_dtype)
    a_yc = (yc.astype(jnp.float32) * icy).astype(mm_dtype)

    dn = (((1,), (1,)), ((), ()))  # contract the feature dim of both operands
    sxx = lax.dot_general(a_xr, a_xc, dn, precision=precision,
                          preferred_element_type=jnp.float32)
    sxy = lax.dot_general(a_xr, a_yc, dn, precision=precision,
                          preferred_element_type=jnp.float32)
    syx = lax.dot_general(a_yr, a_xc, dn, precision=precision,
                          preferred_element_type=jnp.float32)
    syy = lax.dot_general(a_yr, a_yc, dn, precision=precision,
                          preferred_element_type=jnp.float32)

    # Shifted exponentials exp((cos - 1)/temp) in (0, 1]: overflow-safe.
    srx = irx * inv_t
    sry = iry * inv_t
    exx = jnp.exp(sxx * srx - inv_t)
    exy = jnp.exp(sxy * srx - inv_t)
    eyx = jnp.exp(syx * sry - inv_t)
    eyy = jnp.exp(syy * sry - inv_t)

    # Exact self-similarity removal via a global-index diagonal mask (correct
    # even on the bf16 path), plus masking of padded columns if any.
    rows = r0 + lax.broadcasted_iota(jnp.int32, (t, t), 0)
    cols = c0 + lax.broadcasted_iota(jnp.int32, (t, t), 1)
    not_diag = rows != cols
    if has_pad:
        col_ok = cols < b_valid
        m_same = jnp.logical_and(not_diag, col_ok)
        exy = jnp.where(col_ok, exy, 0.0)
        eyx = jnp.where(col_ok, eyx, 0.0)
    else:
        m_same = not_diag
    exx = jnp.where(m_same, exx, 0.0)
    eyy = jnp.where(m_same, eyy, 0.0)

    # Fold the adds before the cross-lane reductions (halves the XLU reduces).
    dtop_ref[...] += jnp.sum(exx + exy, axis=1, keepdims=True)
    dbot_ref[...] += jnp.sum(eyx + eyy, axis=1, keepdims=True)

    @pl.when(j == nj - 1)
    def _finalize():
        pos = jnp.sum(xr.astype(jnp.float32) * yr.astype(jnp.float32),
                      axis=1, keepdims=True) * (irx * iry)
        # Per row pair: log(denom_top) + log(denom_bot) - 2*pos/temp,
        # expressed in the shifted-exponential domain.
        row_loss = (jnp.log(dtop_ref[...]) + jnp.log(dbot_ref[...])
                    + 2.0 * inv_t * (1.0 - pos))
        if has_pad:
            rvalid = (r0 + lax.broadcasted_iota(jnp.int32, (t, 1), 0)) < b_valid
            row_loss = jnp.where(rvalid, row_loss, 0.0)
        out_ref[0, 0] = jnp.sum(row_loss) * scale


def _ntxent_resident_kernel(x_ref, y_ref, ix_ref, iy_ref, out_ref,
                            dtop_ref, dbot_ref, *, t, **params):
    i = pl.program_id(0)
    j = pl.program_id(1)
    r0 = pl.multiple_of(i * t, t)
    c0 = pl.multiple_of(j * t, t)
    _ntxent_body(x_ref[pl.ds(r0, t), :], y_ref[pl.ds(r0, t), :],
                 x_ref[pl.ds(c0, t), :], y_ref[pl.ds(c0, t), :],
                 ix_ref, iy_ref, out_ref, dtop_ref, dbot_ref, t=t, **params)


def _ntxent_stream_kernel(xr_ref, yr_ref, xc_ref, yc_ref, ix_ref, iy_ref,
                          out_ref, dtop_ref, dbot_ref, **params):
    _ntxent_body(xr_ref[...], yr_ref[...], xc_ref[...], yc_ref[...],
                 ix_ref, iy_ref, out_ref, dtop_ref, dbot_ref, **params)


def contrastive_loss(batch_view1, batch_view2, *, temp=0.5, batch_size=None,
                     matmul_dtype=None):
    """NT-Xent (SimCLR) contrastive loss; returns a float32 scalar."""
    assert batch_view1.shape == batch_view2.shape and batch_view1.ndim == 2
    b, d = batch_view1.shape
    if batch_size is None:
        batch_size = b

    v1, v2 = batch_view1, batch_view2
    if v1.dtype not in (jnp.bfloat16, jnp.float32):
        v1 = v1.astype(jnp.float32)
        v2 = v2.astype(jnp.float32)
    in_dtype = v1.dtype
    itemsize = jnp.dtype(in_dtype).itemsize

    if matmul_dtype is None:
        # bf16 MXU fast path only when inputs are already bf16; f32 inputs keep
        # an exact f32 matmul (opt in by passing matmul_dtype=jnp.bfloat16).
        matmul_dtype = jnp.bfloat16 if in_dtype == jnp.bfloat16 else jnp.float32
    precision = (lax.Precision.HIGHEST
                 if jnp.dtype(matmul_dtype) == jnp.dtype(jnp.float32) else None)

    # Feature dim is the lane dim: pad to a multiple of 128 (zero features do
    # not change norms or dot products).
    dp = max(128, _round_up(d, 128))

    vmem_cap = _tpu_vmem_bytes()

    # --- tiling + column-residency decision (generation-aware) -------------
    t, b_pad = _choose_tiling(b, 256)
    temp_bytes = 16 * t * t * _F32 + 6 * t * dp * _F32
    resident_bytes = 2 * b_pad * dp * itemsize + 2 * b_pad * _F32
    resident = resident_bytes + temp_bytes <= vmem_cap - (16 << 20)
    if not resident and vmem_cap >= (96 << 20):
        # v5e/v6e (128 MiB VMEM): larger streamed tiles raise the arithmetic
        # intensity of the column stream past the HBM ridge.
        t, b_pad = _choose_tiling(b, 512)
        temp_bytes = 16 * t * t * _F32 + 6 * t * dp * _F32

    ni = b_pad // t
    has_pad = b_pad != b

    if (b_pad != b) or (dp != d):
        v1 = jnp.pad(v1, ((0, b_pad - b), (0, dp - d)))
        v2 = jnp.pad(v2, ((0, b_pad - b), (0, dp - d)))

    # --- stage 1: per-row inverse L2 norms ----------------------------------
    norm_rows = _norm_block_rows(b_pad, t, dp, itemsize, vmem_cap)
    pre_limit = _clamp_vmem(4 * norm_rows * dp * itemsize + (2 << 20), vmem_cap)
    inv_x, inv_y = _inverse_norms(v1, v2, norm_rows, pre_limit)

    # --- stage 2: fused NT-Xent ---------------------------------------------
    kern_params = dict(t=t, b_valid=b, has_pad=has_pad,
                       inv_t=1.0 / float(temp),
                       scale=1.0 / (2.0 * float(batch_size)),
                       mm_dtype=matmul_dtype, precision=precision)
    vmem_full = pl.BlockSpec(memory_space=pltpu.MemorySpace.VMEM)

    if resident:
        kernel = functools.partial(_ntxent_resident_kernel, **kern_params)
        in_specs = [vmem_full, vmem_full, vmem_full, vmem_full]
        operands = (v1, v2, inv_x, inv_y)
        need = resident_bytes + temp_bytes
    else:
        kernel = functools.partial(_ntxent_stream_kernel, **kern_params)
        row_spec = pl.BlockSpec((t, dp), lambda i, j: (i, 0))
        col_spec = pl.BlockSpec((t, dp), lambda i, j: (j, 0))
        in_specs = [row_spec, row_spec, col_spec, col_spec,
                    vmem_full, vmem_full]
        operands = (v1, v2, v1, v2, inv_x, inv_y)
        need = 8 * t * dp * itemsize + 2 * b_pad * _F32 + temp_bytes

    partials = pl.pallas_call(
        kernel,
        out_shape=jax.ShapeDtypeStruct((ni, 1), jnp.float32),
        grid=(ni, ni),
        in_specs=in_specs,
        out_specs=pl.BlockSpec((1, 1), lambda i, j: (i, 0),
                               memory_space=pltpu.MemorySpace.SMEM),
        scratch_shapes=[pltpu.VMEM((t, 1), jnp.float32),   # denom sums (top rows)
                        pltpu.VMEM((t, 1), jnp.float32)],  # denom sums (bottom rows)
        compiler_params=pltpu.CompilerParams(
            dimension_semantics=("parallel", "arbitrary"),
            vmem_limit_bytes=_clamp_vmem(need + (4 << 20), vmem_cap)),
    )(*operands)

    # Tiny epilogue: sum the per-row-tile partial losses.
    return jnp.sum(partials)


def _reference(v1, v2, temp, bs):
    """Pure-JAX port of the PyTorch ContrastiveLoss module."""
    z_i = v1 / jnp.maximum(jnp.linalg.norm(v1, axis=1, keepdims=True), 1e-12)
    z_j = v2 / jnp.maximum(jnp.linalg.norm(v2, axis=1, keepdims=True), 1e-12)
    r = jnp.concatenate([z_i, z_j], axis=0)
    sim = jnp.matmul(r, r.T, precision=lax.Precision.HIGHEST)
    b = v1.shape[0]
    pos = jnp.concatenate([jnp.diag(sim, k=b)] * 2, axis=0)
    mask = 1.0 - jnp.eye(2 * b, dtype=jnp.float32)
    denom = jnp.sum(mask * jnp.exp(sim / temp), axis=1)
    all_loss = -jnp.log(jnp.exp(pos / temp) / denom)
    return jnp.sum(all_loss) / (2.0 * bs)


if __name__ == "__main__":
    B, D = 8, 32  # module constructed with batch_size=B, hidden=32
    key = jax.random.PRNGKey(0)
    k1, k2 = jax.random.split(key)
    batch_view1 = jax.random.normal(k1, (B, D), dtype=jnp.float32)
    batch_view2 = jax.random.normal(k2, (B, D), dtype=jnp.float32)

    loss = contrastive_loss(batch_view1, batch_view2, temp=0.5, batch_size=B)
    loss = jax.block_until_ready(loss)

    ref = _reference(batch_view1, batch_view2, 0.5, B)
    if not jnp.allclose(loss, ref, rtol=2e-3, atol=2e-3):
        raise SystemExit(f"MISMATCH: kernel={float(loss)} ref={float(ref)}")
    print("KERNEL_OK")
</pallas_src>

<mosaic_0001>
module attributes {stable_mosaic.version = 11 : i64} {
  func.func @_inv_norm_kernel(%arg0: i32, %arg1: memref<8x128xf32, #tpu.memory_space<vmem>>, %arg2: memref<8x128xf32, #tpu.memory_space<vmem>>, %arg3: memref<8x1xf32, #tpu.memory_space<vmem>>, %arg4: memref<8x1xf32, #tpu.memory_space<vmem>>) attributes {dimension_semantics = [#tpu.dimension_semantics<parallel>], iteration_bounds = array<i64: 1>, scalar_prefetch = 0 : i64, scratch_operands = 0 : i64, tpu.core_type = #tpu.core_type<tc>, window_params = [{transform_indices = @transform_0, window_bounds = array<i64: 8, 128>}, {transform_indices = @transform_1, window_bounds = array<i64: 8, 128>}, {transform_indices = @transform_2, window_bounds = array<i64: 8, 1>}, {transform_indices = @transform_3, window_bounds = array<i64: 8, 1>}]} {
    %c0 = arith.constant 0 : index
    %c0_0 = arith.constant 0 : index
    %0 = vector.load %arg1[%c0, %c0_0] : memref<8x128xf32, #tpu.memory_space<vmem>>, vector<8x128xf32>
    %c0_1 = arith.constant 0 : index
    %c0_2 = arith.constant 0 : index
    %1 = vector.load %arg2[%c0_1, %c0_2] : memref<8x128xf32, #tpu.memory_space<vmem>>, vector<8x128xf32>
    %2 = arith.mulf %0, %0 : vector<8x128xf32>
    %cst = arith.constant dense<0.000000e+00> : vector<8xf32>
    %3 = vector.multi_reduction <add>, %2, %cst [1] : vector<8x128xf32> to vector<8xf32>
    %4 = vector.shape_cast %3 : vector<8xf32> to vector<8x1xf32>
    %cst_3 = arith.constant 1.000000e-24 : f32
    %5 = vector.broadcast %cst_3 : f32 to vector<8x1xf32>
    %6 = arith.maximumf %4, %5 : vector<8x1xf32>
    %7 = math.rsqrt %6 : vector<8x1xf32>
    %c0_4 = arith.constant 0 : index
    %c0_5 = arith.constant 0 : index
    %8 = vector.load %arg3[%c0_4, %c0_5] : memref<8x1xf32, #tpu.memory_space<vmem>>, vector<8x1xf32>
    tpu.vector_store %arg3[%c0_4, %c0_5], %7 {strides = array<i32>} : memref<8x1xf32, #tpu.memory_space<vmem>>, vector<8x1xf32>,
    %9 = arith.mulf %1, %1 : vector<8x128xf32>
    %cst_6 = arith.constant dense<0.000000e+00> : vector<8xf32>
    %10 = vector.multi_reduction <add>, %9, %cst_6 [1] : vector<8x128xf32> to vector<8xf32>
    %11 = vector.shape_cast %10 : vector<8xf32> to vector<8x1xf32>
    %cst_7 = arith.constant 1.000000e-24 : f32
    %12 = vector.broadcast %cst_7 : f32 to vector<8x1xf32>
    %13 = arith.maximumf %11, %12 : vector<8x1xf32>
    %14 = math.rsqrt %13 : vector<8x1xf32>
    %c0_8 = arith.constant 0 : index
    %c0_9 = arith.constant 0 : index
    %15 = vector.load %arg4[%c0_8, %c0_9] : memref<8x1xf32, #tpu.memory_space<vmem>>, vector<8x1xf32>
    tpu.vector_store %arg4[%c0_8, %c0_9], %14 {strides = array<i32>} : memref<8x1xf32, #tpu.memory_space<vmem>>, vector<8x1xf32>,
    return
  }
  func.func @transform_0(%arg0: i32) -> (i32, i32) {
    %c0_i32 = arith.constant 0 : i32
    %c0_i32_0 = arith.constant 0 : i32
    return %arg0, %c0_i32 : i32, i32
  }
  func.func @transform_1(%arg0: i32) -> (i32, i32) {
    %c0_i32 = arith.constant 0 : i32
    %c0_i32_0 = arith.constant 0 : i32
    return %arg0, %c0_i32 : i32, i32
  }
  func.func @transform_2(%arg0: i32) -> (i32, i32) {
    %c0_i32 = arith.constant 0 : i32
    %c0_i32_0 = arith.constant 0 : i32
    return %arg0, %c0_i32 : i32, i32
  }
  func.func @transform_3(%arg0: i32) -> (i32, i32) {
    %c0_i32 = arith.constant 0 : i32
    %c0_i32_0 = arith.constant 0 : i32
    return %arg0, %c0_i32 : i32, i32
  }
}

</mosaic_0001>

<llo_original>
// kernel: tpu_custom_call.1
$region0: #{tpu_custom_call.1}
  #allocation0 [shape = 'u32[]', space=smem, size = 0x4, offset = 0x4, fixed_abs, tag = 'smem constant byte address 0x4 - core index']
  #allocation1 [shape = 'u32[144,128]{1,0:T(1,128)}', space=vmem, size = 0x12000, scoped, tag = 'internal scratch']
  %s0 = inlined_call_operand.hbm [shape: f32[8,128], index: 0, kind: input, shape index: {}]
  %s1 = inlined_call_operand.hbm [shape: f32[8,128], index: 1, kind: input, shape index: {}]
  %s2 = inlined_call_operand.vmem [shape: f32[8,1], index: 2, kind: output, shape index: {0}]
  %s3 = inlined_call_operand.vmem [shape: f32[8,1], index: 3, kind: output, shape index: {1}]
  %4 = xla_tuple %s2, %s3
  %s5 = sld [smem:[#allocation0]]
  $region34: #{tpu_custom_call.1} parent=0
    _
  %s7 = ssub.s32 1, %s5
  %s8 = scalar_select 0, %s7, %s5
  $region1: #{tpu_custom_call.1} parent=0
    #allocation2 [shape = 'u8[4096]{0}', space=vmem, size = 0x1000, scoped, tag = 'input window, operand 0, single buffered']
    #allocation3 [shape = 's32[1]{0}', space=sflag, size = 0x4, scoped, tag = 'scoped memory for tpu_custom_call.1']
    #allocation4 [shape = 'u8[4096]{0}', space=vmem, size = 0x1000, scoped, tag = 'input window, operand 1, single buffered']
    #allocation5 [shape = 's32[1]{0}', space=sflag, size = 0x4, scoped, tag = 'scoped memory for tpu_custom_call.1']
    %9 = vsyncpa [#allocation3], 0
    %10 = vsyncpa [#allocation5], 0
    // Predicated region
    $region2: #{tpu_custom_call.1} parent=1 // pred_check
      _
    $region3: #{tpu_custom_call.1} parent=1 // pred_check_branch
      %12 = sbr.rel (0) target = $region5
    $region4: #{tpu_custom_call.1} parent=1 // pred_region
      %s14 = ssub.s32 128, 128
      %15 = vsyncadd [#allocation3], %s14
      %s17 = sshll.u32 [#allocation2], 4
      %s18 = int_to_ptr.vmem [resolvable:$true] %s17
      %20 = dma.hbm_to_vmem [thread:$0]  %s0, 128, %s18, [#allocation3]
    $region5: #{tpu_custom_call.1} parent=1 // pred_fallthru
      _
    // Predicated region
    $region6: #{tpu_custom_call.1} parent=1 // pred_check
      _
    $region7: #{tpu_custom_call.1} parent=1 // pred_check_branch
      %22 = sbr.rel (0) target = $region9
    $region8: #{tpu_custom_call.1} parent=1 // pred_region
      %s24 = ssub.s32 128, 128
      %25 = vsyncadd [#allocation5], %s24
      %s27 = sshll.u32 [#allocation4], 4
      %s28 = int_to_ptr.vmem [resolvable:$true] %s27
      %30 = dma.hbm_to_vmem [thread:$0]  %s1, 128, %s28, [#allocation5]
    $region9: #{tpu_custom_call.1} parent=1 // pred_fallthru
      _
    // Predicated region
    $region10: #{tpu_custom_call.1} parent=1 // pred_check
      _
    $region11: #{tpu_custom_call.1} parent=1 // pred_check_branch
      %32 = sbr.rel (0) target = $region13
    $region12: #{tpu_custom_call.1} parent=1 // pred_region
      %33 = dma.done [#allocation3], 128
    $region13: #{tpu_custom_call.1} parent=1 // pred_fallthru
      _
    // Predicated region
    $region14: #{tpu_custom_call.1} parent=1 // pred_check
      _
    $region15: #{tpu_custom_call.1} parent=1 // pred_check_branch
      %35 = sbr.rel (0) target = $region17
    $region16: #{tpu_custom_call.1} parent=1 // pred_region
      %36 = dma.done [#allocation5], 128
    $region17: #{tpu_custom_call.1} parent=1 // pred_fallthru
      _
    %v37 = vld [vmem:[#allocation2] sm:$0xff]
    %v38 = vld [vmem:[#allocation4] sm:$0xff]
    %v39 = vmul.f32 %v37, %v37
    %40 = vadd.xlane.f32.xlu0 %v39
    %v41 = vpop.xlane.xlu0 %40
    %v42 = vmax.f32 %v41, 1e-24
    %v43 = vrsqrt.pop %v42
    %vm44 = vcmask 7168
    %45 = vst.msk [vmem:[%s2] sm:$0xff] %vm44, %v43
    %v46 = vmul.f32 %v38, %v38
    %47 = vadd.xlane.f32.xlu0 %v46
    %v48 = vpop.xlane.xlu0 %47
    %v49 = vmax.f32 %v48, 1e-24
    %v50 = vrsqrt.pop %v49
    %51 = vst.msk [vmem:[%s3] sm:$0xff] %vm44, %v50
    // Predicated region
    $region18: #{tpu_custom_call.1} parent=1 // pred_check
      _
    $region19: #{tpu_custom_call.1} parent=1 // pred_check_branch
      %53 = sbr.rel (0) target = $region21
    $region20: #{tpu_custom_call.1} parent=1 // pred_region
      _
    $region21: #{tpu_custom_call.1} parent=1 // pred_fallthru
      _
    // Predicated region
    $region22: #{tpu_custom_call.1} parent=1 // pred_check
      _
    $region23: #{tpu_custom_call.1} parent=1 // pred_check_branch
      %55 = sbr.rel (0) target = $region25
    $region24: #{tpu_custom_call.1} parent=1 // pred_region
      _
    $region25: #{tpu_custom_call.1} parent=1 // pred_fallthru
      _
    // Predicated region
    $region26: #{tpu_custom_call.1} parent=1 // pred_check
      _
    $region27: #{tpu_custom_call.1} parent=1 // pred_check_branch
      %57 = sbr.rel (0) target = $region29
    $region28: #{tpu_custom_call.1} parent=1 // pred_region
      _
    $region29: #{tpu_custom_call.1} parent=1 // pred_fallthru
      _
    // Predicated region
    $region30: #{tpu_custom_call.1} parent=1 // pred_check
      _
    $region31: #{tpu_custom_call.1} parent=1 // pred_check_branch
      %59 = sbr.rel (0) target = $region33
    $region32: #{tpu_custom_call.1} parent=1 // pred_region
      _
    $region33: #{tpu_custom_call.1} parent=1 // pred_fallthru
      _
    %60 = vsyncpa [#allocation3], 1
    %61 = vsyncpa [#allocation5], 1

</llo_original>
